<compile_context>
chip_gen: v7x
topology: tpu7x:2x2x1
jax: 0.10.0
libtpu: 0.0.40
codegen_flags: <defaults>
</compile_context>

<pallas_src>
import functools

import jax
import jax.numpy as jnp
from jax import lax
from jax.experimental import pallas as pl
from jax.experimental.pallas import tpu as pltpu

_LANE = 128
_CHUNK_ROWS = 2048            # in-kernel fold granularity (1 MiB f32 working set)
_MIN_PALLAS_ELEMS = 1 << 16   # below this, pallas_call launch overhead dominates
_VMEM_LIMIT_BYTES = 32 << 20  # room for 8 MiB blocks double-buffered everywhere


def _device_kind():
    try:
        return jax.devices()[0].device_kind.lower()
    except Exception:
        return ""


def _tensorcores_per_chip(kind):
    # v7x (and v4 megacore) expose 2 TensorCores per JAX device; v5e/v6e have 1.
    # TODO(synk): verify on v7x (xprof per-core trace) that the leading
    # "parallel" grid axis really shards across both cores; if not, switch it
    # to pltpu.CORE_PARALLEL.
    return 2 if ("v7" in kind or "v4" in kind) else 1


def _target_block_bytes(kind):
    # Per-block DMA size. v5e (0.82 TB/s, small default scoped VMEM): 4 MiB is
    # enough to amortize the ~0.35 us per-grid-step overhead.  v6e / v7x
    # (1.4-3.2 TB/s): 8 MiB blocks (16 MiB double-buffered, under the 32 MiB
    # limit we request).
    return (4 << 20) if "v5" in kind else (8 << 20)


def _gan_loss_kernel(x_ref, o_ref, *, mode, rows_main, block_rows, chunk_rows,
                     acc_rows, blocks_per_slice):
    """Accumulate lane-dense partial sums of the hinge transform into this
    slice's resident (acc_rows, 128) f32 output block.

    mode: 0 = generator          sum(x)
          1 = D, target real     sum(min(x - 1, 0))
          2 = D, target fake     sum(min(-x - 1, 0))

    All bounds arithmetic is in 128-lane-row units (int32-safe for inputs up to
    ~2**31 rows, i.e. ~2.7e11 elements).
    """
    c = pl.program_id(0)                    # slice / TensorCore index ("parallel")
    i = pl.program_id(1)                    # row-block index in slice ("arbitrary")
    blk = c * blocks_per_slice + i          # global row-block index (may be surplus)

    @pl.when(i == 0)
    def _init():
        o_ref[...] = jnp.zeros_like(o_ref)

    def hinge(v):
        v = v.astype(jnp.float32)           # cast in-kernel; no wrapper-side astype
        if mode == 0:
            return v
        if mode == 1:
            return jnp.minimum(v - 1.0, 0.0)
        return jnp.minimum(-v - 1.0, 0.0)

    n_chunks = block_rows // chunk_rows
    folds = chunk_rows // acc_rows

    def fold(v):                            # (chunk_rows, 128) -> (acc_rows, 128)
        if folds == 1:
            return v
        return jnp.sum(v.reshape(folds, acc_rows, _LANE), axis=0)

    def chunk(j):                           # static start: j is a Python int
        return x_ref[pl.ds(j * chunk_rows, chunk_rows), :]

    in_bounds = (blk + 1) * block_rows <= rows_main

    @pl.when(in_bounds)
    def _fast():                            # interior blocks: no masking at all
        acc = jnp.zeros((acc_rows, _LANE), jnp.float32)
        for j in range(n_chunks):           # static chunk loop, VPU adds only
            acc = acc + fold(hinge(chunk(j)))
        o_ref[...] += acc

    @pl.when(jnp.logical_not(in_bounds))
    def _tail():                            # boundary / surplus blocks only
        row_id = lax.broadcasted_iota(jnp.int32, (chunk_rows, _LANE), 0)
        base = blk * block_rows
        acc = jnp.zeros((acc_rows, _LANE), jnp.float32)
        for j in range(n_chunks):
            valid = base + j * chunk_rows + row_id < rows_main
            acc = acc + fold(jnp.where(valid, hinge(chunk(j)), 0.0))
        o_ref[...] += acc


def _hinge_jnp(x, mode):
    x = x.astype(jnp.float32)
    if mode == 0:
        return x
    if mode == 1:
        return jnp.minimum(x - 1.0, 0.0)
    return jnp.minimum(-x - 1.0, 0.0)


def gan_loss(x, target_is_real, for_discriminator=False, gan_mode="hinge",
             use_pallas=None):
    """JAX/Pallas equivalent of GANLoss(gan_mode='hinge').forward(...)."""
    if gan_mode != "hinge":
        raise ValueError(f"Unexpected gan_mode {gan_mode}")

    if for_discriminator:
        mode = 1 if target_is_real else 2
    else:
        assert target_is_real, "The generator's hinge loss must be aiming for real"
        mode = 0

    total = int(x.size)
    itemsize = jnp.dtype(x.dtype).itemsize
    sub = 8 * max(1, 4 // itemsize)                 # sublane rows: 8 / 16 / 32
    rows_main = (total // _LANE) // sub * sub       # kernel-visible aligned rows

    if use_pallas is None:
        use_pallas = total >= _MIN_PALLAS_ELEMS
    if rows_main == 0:
        use_pallas = False

    flat = jnp.reshape(x, (-1,))                    # free for contiguous layouts
    if not use_pallas:
        # Tiny inputs: pallas_call launch + trailing XLA reduce dominate.
        return -jnp.mean(_hinge_jnp(flat, mode))

    kind = _device_kind()
    target_rows = max(_CHUNK_ROWS,
                      (_target_block_bytes(kind) // (_LANE * itemsize))
                      // _CHUNK_ROWS * _CHUNK_ROWS)

    if rows_main <= _CHUNK_ROWS:
        block_rows = chunk_rows = rows_main         # single full-array block
    else:
        # block_rows <= rows_main always (no block larger than the array);
        # the last (partial) block is masked in-kernel.
        block_rows = min(target_rows, (rows_main // _CHUNK_ROWS) * _CHUNK_ROWS)
        chunk_rows = _CHUNK_ROWS

    if chunk_rows % 64 == 0:
        acc_rows = 64
    elif chunk_rows % 8 == 0:
        acc_rows = 8
    else:
        acc_rows = chunk_rows

    if rows_main + 2 * block_rows >= 2**31:
        raise NotImplementedError("input too large for int32 row indexing")

    gb = pl.cdiv(rows_main, block_rows)             # total row blocks
    num_slices = min(_tensorcores_per_chip(kind), gb)
    bpc = pl.cdiv(gb, num_slices)                   # blocks per slice / core

    # No jnp.pad: the kernel sees only the aligned prefix.  When `total` is
    # already 128*sub aligned (the common NCHW case) this is a zero-copy
    # reshape; otherwise only the small aligned prefix is sliced and the
    # < sub*128+128 element ragged tail is reduced by XLA below.
    main_elems = rows_main * _LANE
    prefix = flat if main_elems == total else flat[:main_elems]
    x2 = jnp.reshape(prefix, (rows_main, _LANE))

    def x_index_map(c, i):
        # Surplus iterations (only when gb % num_slices != 0) re-read the last
        # block; their contribution is fully masked to zero in-kernel.
        return (jnp.minimum(c * bpc + i, gb - 1), 0)

    kernel = functools.partial(
        _gan_loss_kernel, mode=mode, rows_main=rows_main, block_rows=block_rows,
        chunk_rows=chunk_rows, acc_rows=acc_rows, blocks_per_slice=bpc)

    partial_sums = pl.pallas_call(
        kernel,
        out_shape=jax.ShapeDtypeStruct((num_slices * acc_rows, _LANE),
                                       jnp.float32),
        grid=(num_slices, bpc),
        in_specs=[pl.BlockSpec((block_rows, _LANE), x_index_map)],
        out_specs=pl.BlockSpec((acc_rows, _LANE), lambda c, i: (c, 0)),
        compiler_params=pltpu.CompilerParams(
            dimension_semantics=("parallel", "arbitrary"),
            vmem_limit_bytes=_VMEM_LIMIT_BYTES),
    )(x2)

    total_sum = jnp.sum(partial_sums)
    if main_elems != total:
        total_sum = total_sum + jnp.sum(_hinge_jnp(flat[main_elems:], mode))
    return -total_sum / jnp.float32(total)


def _reference(x, target_is_real, for_discriminator):
    x = x.astype(jnp.float32)
    if for_discriminator:
        if target_is_real:
            return -jnp.mean(jnp.minimum(x - 1.0, 0.0))
        return -jnp.mean(jnp.minimum(-x - 1.0, 0.0))
    return -jnp.mean(x)


if __name__ == "__main__":
    cases = [
        (True, True),    # D loss, real target
        (False, True),   # D loss, fake target
        (True, False),   # G loss
    ]

    def check(x, use_pallas, rtol=1e-4, atol=1e-5):
        for target_is_real, for_disc in cases:
            loss = jax.block_until_ready(
                gan_loss(x, target_is_real, for_discriminator=for_disc,
                         use_pallas=use_pallas))
            ref = _reference(x, target_is_real, for_disc)
            assert jnp.allclose(loss, ref, rtol=rtol, atol=atol), \
                (x.shape, str(x.dtype), target_is_real, for_disc, loss, ref)

    k1, k2, k3, k4 = jax.random.split(jax.random.PRNGKey(0), 4)

    # Typical small NCHW prediction map -> small-input jnp fallback path.
    x_small = jax.random.normal(k1, (2, 4, 16, 16), dtype=jnp.float32)
    check(x_small, use_pallas=None)
    # Same input forced through the Pallas kernel (single tiny block).
    check(x_small, use_pallas=True)

    # Medium map: multi-block grid with a masked partial final block.
    x_med = jax.random.normal(k2, (2, 4, 256, 320), dtype=jnp.float32)
    check(x_med, use_pallas=None)

    # Larger map: full-size (target-byte) interior block + masked tail block.
    x_big = jax.random.normal(k3, (2, 4, 384, 384), dtype=jnp.float32)
    check(x_big, use_pallas=None)

    # Non-128-multiple element count: aligned prefix via kernel, ragged tail in XLA.
    x_ragged = jax.random.normal(k4, (3, 3, 37, 41), dtype=jnp.float32)
    check(x_ragged, use_pallas=True)

    # bf16 input: dtype-aware sublane packing / block sizing, cast in-kernel.
    x_bf16 = jax.random.normal(k1, (2, 4, 64, 64), dtype=jnp.bfloat16)
    check(x_bf16, use_pallas=True, rtol=1e-3, atol=1e-3)

    print("KERNEL_OK")
</pallas_src>

<mosaic_0001>
module attributes {stable_mosaic.version = 11 : i64} {
  func.func @_gan_loss_kernel(%arg0: i32, %arg1: i32, %arg2: memref<16x128xf32, #tpu.memory_space<vmem>>, %arg3: memref<8x128xf32, #tpu.memory_space<vmem>>) attributes {dimension_semantics = [#tpu.dimension_semantics<parallel>, #tpu.dimension_semantics<arbitrary>], iteration_bounds = array<i64: 1, 1>, scalar_prefetch = 0 : i64, scratch_operands = 0 : i64, tpu.core_type = #tpu.core_type<tc>, window_params = [{transform_indices = @transform_0, window_bounds = array<i64: 16, 128>}, {transform_indices = @transform_1, window_bounds = array<i64: 8, 128>}]} {
    %c1_i32 = arith.constant 1 : i32
    %0 = arith.muli %arg0, %c1_i32 : i32
    %1 = arith.addi %0, %arg1 : i32
    %c0_i32 = arith.constant 0 : i32
    %2 = arith.cmpi eq, %arg1, %c0_i32 : i32
    %3 = arith.extui %2 : i1 to i32
    %c0_i32_0 = arith.constant 0 : i32
    %4 = arith.cmpi ne, %3, %c0_i32_0 : i32
    scf.if %4 {
      %cst = arith.constant 0.000000e+00 : f32
      %13 = vector.broadcast %cst : f32 to vector<8x128xf32>
      %c0 = arith.constant 0 : index
      %c0_5 = arith.constant 0 : index
      %14 = vector.load %arg3[%c0, %c0_5] : memref<8x128xf32, #tpu.memory_space<vmem>>, vector<8x128xf32>
      tpu.vector_store %arg3[%c0, %c0_5], %13 {strides = array<i32>} : memref<8x128xf32, #tpu.memory_space<vmem>>, vector<8x128xf32>,
    } else {
    }
    %c1_i32_1 = arith.constant 1 : i32
    %5 = arith.addi %1, %c1_i32_1 : i32
    %c16_i32 = arith.constant 16 : i32
    %6 = arith.muli %5, %c16_i32 : i32
    %c16_i32_2 = arith.constant 16 : i32
    %7 = arith.cmpi sle, %6, %c16_i32_2 : i32
    %8 = arith.extui %7 : i1 to i32
    %c0_i32_3 = arith.constant 0 : i32
    %9 = arith.cmpi ne, %8, %c0_i32_3 : i32
    scf.if %9 {
      %cst = arith.constant 0.000000e+00 : f32
      %13 = vector.broadcast %cst : f32 to vector<8x128xf32>
      %c0 = arith.constant 0 : index
      %c0_5 = arith.constant 0 : index
      %14 = vector.load %arg2[%c0, %c0_5] : memref<16x128xf32, #tpu.memory_space<vmem>>, vector<16x128xf32>
      %cst_6 = arith.constant 1.000000e+00 : f32
      %15 = vector.broadcast %cst_6 : f32 to vector<16x128xf32>
      %16 = arith.subf %14, %15 : vector<16x128xf32>
      %cst_7 = arith.constant 0.000000e+00 : f32
      %17 = vector.broadcast %cst_7 : f32 to vector<16x128xf32>
      %18 = arith.minimumf %16, %17 : vector<16x128xf32>
      %19 = vector.shape_cast %18 : vector<16x128xf32> to vector<2x8x128xf32>
      %cst_8 = arith.constant dense<0.000000e+00> : vector<8x128xf32>
      %20 = vector.multi_reduction <add>, %19, %cst_8 [0] : vector<2x8x128xf32> to vector<8x128xf32>
      %21 = arith.addf %13, %20 : vector<8x128xf32>
      %c0_9 = arith.constant 0 : index
      %c0_10 = arith.constant 0 : index
      %22 = vector.load %arg3[%c0_9, %c0_10] : memref<8x128xf32, #tpu.memory_space<vmem>>, vector<8x128xf32>
      %23 = arith.addf %22, %21 : vector<8x128xf32>
      %c0_11 = arith.constant 0 : index
      %c0_12 = arith.constant 0 : index
      %24 = vector.load %arg3[%c0_11, %c0_12] : memref<8x128xf32, #tpu.memory_space<vmem>>, vector<8x128xf32>
      tpu.vector_store %arg3[%c0_11, %c0_12], %23 {strides = array<i32>} : memref<8x128xf32, #tpu.memory_space<vmem>>, vector<8x128xf32>,
    } else {
    }
    %true = arith.constant true
    %10 = arith.xori %7, %true : i1
    %11 = arith.extui %10 : i1 to i32
    %c0_i32_4 = arith.constant 0 : i32
    %12 = arith.cmpi ne, %11, %c0_i32_4 : i32
    scf.if %12 {
      %13 = tpu.iota {dimensions = array<i32: 0>} : vector<16x128xi32>
      %c16_i32_5 = arith.constant 16 : i32
      %14 = arith.muli %1, %c16_i32_5 : i32
      %cst = arith.constant 0.000000e+00 : f32
      %15 = vector.broadcast %cst : f32 to vector<8x128xf32>
      %c0_i32_6 = arith.constant 0 : i32
      %16 = arith.addi %14, %c0_i32_6 : i32
      %17 = vector.broadcast %16 : i32 to vector<16x128xi32>
      %18 = arith.addi %17, %13 : vector<16x128xi32>
      %c16_i32_7 = arith.constant 16 : i32
      %19 = vector.broadcast %c16_i32_7 : i32 to vector<16x128xi32>
      %20 = arith.cmpi slt, %18, %19 : vector<16x128xi32>
      %c0 = arith.constant 0 : index
      %c0_8 = arith.constant 0 : index
      %21 = vector.load %arg2[%c0, %c0_8] : memref<16x128xf32, #tpu.memory_space<vmem>>, vector<16x128xf32>
      %cst_9 = arith.constant 1.000000e+00 : f32
      %22 = vector.broadcast %cst_9 : f32 to vector<16x128xf32>
      %23 = arith.subf %21, %22 : vector<16x128xf32>
      %cst_10 = arith.constant 0.000000e+00 : f32
      %24 = vector.broadcast %cst_10 : f32 to vector<16x128xf32>
      %25 = arith.minimumf %23, %24 : vector<16x128xf32>
      %cst_11 = arith.constant 0.000000e+00 : f32
      %26 = vector.broadcast %cst_11 : f32 to vector<16x128xf32>
      %27 = arith.select %20, %25, %26 : vector<16x128xi1>, vector<16x128xf32>
      %28 = vector.shape_cast %27 : vector<16x128xf32> to vector<2x8x128xf32>
      %cst_12 = arith.constant dense<0.000000e+00> : vector<8x128xf32>
      %29 = vector.multi_reduction <add>, %28, %cst_12 [0] : vector<2x8x128xf32> to vector<8x128xf32>
      %30 = arith.addf %15, %29 : vector<8x128xf32>
      %c0_13 = arith.constant 0 : index
      %c0_14 = arith.constant 0 : index
      %31 = vector.load %arg3[%c0_13, %c0_14] : memref<8x128xf32, #tpu.memory_space<vmem>>, vector<8x128xf32>
      %32 = arith.addf %31, %30 : vector<8x128xf32>
      %c0_15 = arith.constant 0 : index
      %c0_16 = arith.constant 0 : index
      %33 = vector.load %arg3[%c0_15, %c0_16] : memref<8x128xf32, #tpu.memory_space<vmem>>, vector<8x128xf32>
      tpu.vector_store %arg3[%c0_15, %c0_16], %32 {strides = array<i32>} : memref<8x128xf32, #tpu.memory_space<vmem>>, vector<8x128xf32>,
    } else {
    }
    return
  }
  func.func @transform_0(%arg0: i32, %arg1: i32) -> (i32, i32) {
    %c1_i32 = arith.constant 1 : i32
    %0 = arith.muli %arg0, %c1_i32 : i32
    %1 = arith.addi %0, %arg1 : i32
    %c0_i32 = arith.constant 0 : i32
    %2 = arith.minsi %1, %c0_i32 : i32
    %c0_i32_0 = arith.constant 0 : i32
    %c0_i32_1 = arith.constant 0 : i32
    return %2, %c0_i32_0 : i32, i32
  }
  func.func @transform_1(%arg0: i32, %arg1: i32) -> (i32, i32) {
    %c0_i32 = arith.constant 0 : i32
    %c0_i32_0 = arith.constant 0 : i32
    return %arg0, %c0_i32 : i32, i32
  }
}

</mosaic_0001>

<llo_original>
// kernel: tpu_custom_call.1
$region0: #{tpu_custom_call.1}
  #allocation0 [shape = 'u32[]', space=smem, size = 0x4, offset = 0x4, fixed_abs, tag = 'smem constant byte address 0x4 - core index']
  #allocation1 [shape = 'u32[144,128]{1,0:T(1,128)}', space=vmem, size = 0x12000, scoped, tag = 'internal scratch']
  %s0 = inlined_call_operand.hbm [shape: f32[16,128], index: 0, kind: input, shape index: {}]
  %s1 = inlined_call_operand.hbm [shape: f32[8,128], index: 1, kind: output, shape index: {}]
  %s2 = sld [smem:[#allocation0]]
  $region30: #{tpu_custom_call.1} parent=0
    _
  %s4 = ssub.s32 1, %s2
  %s5 = scalar_select 0, %s4, %s2
  $region1: #{tpu_custom_call.1} parent=0
    #allocation2 [shape = 'u8[8192]{0}', space=vmem, size = 0x2000, scoped, tag = 'input window, operand 0, single buffered']
    #allocation3 [shape = 's32[1]{0}', space=sflag, size = 0x4, scoped, tag = 'scoped memory for tpu_custom_call.1']
    #allocation4 [shape = 's32[1]{0}', space=sflag, size = 0x4, scoped, tag = 'scoped memory for tpu_custom_call.1']
    #allocation5 [shape = 'u8[4096]{0}', space=vmem, size = 0x1000, scoped, tag = 'output window, operand 0, single buffered']
    %6 = vsyncpa [#allocation3], 0
    %7 = vsyncpa [#allocation4], 0
    // Predicated region
    $region2: #{tpu_custom_call.1} parent=1 // pred_check
      _
    $region3: #{tpu_custom_call.1} parent=1 // pred_check_branch
      %9 = sbr.rel (0) target = $region5
    $region4: #{tpu_custom_call.1} parent=1 // pred_region
      %s10 = sadd.s32 0, 0
      %p11 = scmp.lt.s32.totalorder %s10, 0
      %s12 = scalar_select %p11, %s10, 0
      %s13 = smul.u32 2, %s12
      %s15 = ssub.s32 256, 256
      %16 = vsyncadd [#allocation3], %s15
      %s17 = smul.addr %s13, 128
      %s18 = scalar_lea.hbm %s0, %s17
      %s19 = sshll.u32 [#allocation2], 4
      %s20 = int_to_ptr.vmem [resolvable:$true] %s19
      %25 = dma.hbm_to_vmem [thread:$0]  %s18, 256, %s20, [#allocation3], 128, 128, 8
    $region5: #{tpu_custom_call.1} parent=1 // pred_fallthru
      _
    // Predicated region
    $region6: #{tpu_custom_call.1} parent=1 // pred_check
      _
    $region7: #{tpu_custom_call.1} parent=1 // pred_check_branch
      %27 = sbr.rel (0) target = $region9
    $region8: #{tpu_custom_call.1} parent=1 // pred_region
      %28 = dma.done [#allocation3], 256
    $region9: #{tpu_custom_call.1} parent=1 // pred_fallthru
      _
    %s29 = sadd.s32 0, 0
    %p30 = scmp.lt.s32.totalorder %s29, 0
    %s31 = scalar_select %p30, %s29, 0
    %s32 = smul.u32 2, %s31
    %s33 = sadd.s32 0, 0
    %p34 = scmp.eq.s32.totalorder 0, 0
    // Predicated region
    $region10: #{tpu_custom_call.1} parent=1 // pred_check
      %p35 = pneg %p34
    $region11: #{tpu_custom_call.1} parent=1 // pred_check_branch
      %37 = sbr.rel (%p35) target = $region13
    $region12: #{tpu_custom_call.1} parent=1 // pred_region
      %38 = vst [vmem:[#allocation5] sm:$0xff] 0.0
    $region13: #{tpu_custom_call.1} parent=1 // pred_fallthru
      _
    %s39 = sadd.s32 %s33, 1
    %s40 = smul.u32 %s39, 16
    %p41 = scmp.le.s32.totalorder %s40, 16
    // Predicated region
    $region14: #{tpu_custom_call.1} parent=1 // pred_check
      %p42 = pneg %p41
    $region15: #{tpu_custom_call.1} parent=1 // pred_check_branch
      %44 = sbr.rel (%p42) target = $region17
    $region16: #{tpu_custom_call.1} parent=1 // pred_region
      %v45 = vld [vmem:[#allocation2] sm:$0xff]
      %v46 = vld [vmem:[#allocation2 + $0x8] sm:$0xff]
      %v47 = vsub.f32 %v45, 1.0
      %v48 = vsub.f32 %v46, 1.0
      %v49 = vmin.f32 %v47, 0.0
      %v50 = vmin.f32 %v48, 0.0
      %v51 = vadd.f32 %v49, %v50
      %v52 = vadd.f32 %v51, 0.0
      %v53 = vld [vmem:[#allocation5] sm:$0xff]
      %v54 = vadd.f32 %v53, %v52
      %55 = vst [vmem:[#allocation5] sm:$0xff] %v54
    $region17: #{tpu_custom_call.1} parent=1 // pred_fallthru
      _
    %p56 = scmp.gt.s32.totalorder %s40, 16
    // Predicated region
    $region18: #{tpu_custom_call.1} parent=1 // pred_check
      %p57 = pneg %p56
    $region19: #{tpu_custom_call.1} parent=1 // pred_check_branch
      %59 = sbr.rel (%p57) target = $region21
    $region20: #{tpu_custom_call.1} parent=1 // pred_region
      %v60 = vlaneseq
      %v61 = vshrl.u32 %v60, 7
      %v62 = vadd.s32 %v61, 8
      %s63 = smul.u32 %s33, 16
      %v64 = vstv %s63
      %v65 = vadd.s32 %v64, %v61
      %v66 = vadd.s32 %v64, %v62
      %vm67 = vcmp.lt.s32.totalorder %v65, 16
      %vm68 = vcmp.lt.s32.totalorder %v66, 16
      %v69 = vld [vmem:[#allocation2] sm:$0xff]
      %v70 = vld [vmem:[#allocation2 + $0x8] sm:$0xff]
      %v71 = vsub.f32 %v69, 1.0
      %v72 = vsub.f32 %v70, 1.0
      %v73 = vmin.f32 %v71, 0.0
      %v74 = vmin.f32 %v72, 0.0
      %v75 = vsel %vm67, %v73, 0.0
      %v76 = vsel %vm68, %v74, 0.0
      %v77 = vadd.f32 %v75, %v76
      %v78 = vadd.f32 %v77, 0.0
      %v79 = vld [vmem:[#allocation5] sm:$0xff]
      %v80 = vadd.f32 %v79, %v78
      %81 = vst [vmem:[#allocation5] sm:$0xff] %v80
    $region21: #{tpu_custom_call.1} parent=1 // pred_fallthru
      _
    // Predicated region
    $region22: #{tpu_custom_call.1} parent=1 // pred_check
      _
    $region23: #{tpu_custom_call.1} parent=1 // pred_check_branch
      %83 = sbr.rel (0) target = $region25
    $region24: #{tpu_custom_call.1} parent=1 // pred_region
      %s85 = ssub.s32 128, 128
      %86 = vsyncadd [#allocation4], %s85
      %s88 = sshll.u32 [#allocation5], 4
      %s89 = int_to_ptr.vmem [resolvable:$true] %s88
      %91 = dma.vmem_to_hbm [thread:$0]  %s89, 128, %s1, [#allocation4]
    $region25: #{tpu_custom_call.1} parent=1 // pred_fallthru
      _
    // Predicated region
    $region26: #{tpu_custom_call.1} parent=1 // pred_check
      _
    $region27: #{tpu_custom_call.1} parent=1 // pred_check_branch
      %93 = sbr.rel (0) target = $region29
    $region28: #{tpu_custom_call.1} parent=1 // pred_region
      %94 = dma.done [#allocation4], 128
    $region29: #{tpu_custom_call.1} parent=1 // pred_fallthru
      _
    %95 = vsyncpa [#allocation3], 1
    %96 = vsyncpa [#allocation4], 1

</llo_original>
